<compile_context>
chip_gen: v5e
topology: v5e:2x2
jax: 0.10.0
libtpu: 0.0.40
codegen_flags: <defaults>
</compile_context>

<pallas_src>
import math

import jax
import jax.numpy as jnp
from jax.experimental import pallas as pl
from jax.experimental.pallas import tpu as pltpu

# ----------------------------- config ---------------------------------------
B = 2          # batch
S = 8          # sequence length
H = 32         # hidden size
NH = 4         # num heads
DH = H // NH   # head dim
FF = 64        # inner_linear
LN_EPS = 1e-5  # PyTorch nn.LayerNorm default

# Weight-slab lane offsets: every weight block starts on a 128-lane (vreg)
# boundary so its in-kernel slice begins at lane 0 of a vreg.
_W_QKV_OFF = 0      # (H, 3H)   rows 0:H
_W_OUT_OFF = 128    # (H, H)    rows 0:H
_W_FF1_OFF = 256    # (H, FF)   rows 0:H
_W_FF2_OFF = 384    # (FF, H)   rows 0:FF
_W_COLS = 512


# ----------------------------- kernel ---------------------------------------
def _layernorm(v, g, b):
    mu = jnp.mean(v, axis=-1, keepdims=True)
    var = jnp.mean((v - mu) ** 2, axis=-1, keepdims=True)
    return (v - mu) * jax.lax.rsqrt(var + LN_EPS) * g + b


def encoder_block_kernel(x_ref, w_ref, p_ref, y_ref):
    # (B, S, H) -> (B*S, H): leading-dim merge only, no lane/sublane change.
    xf = x_ref[...].reshape(B * S, H)

    # --- biases / LayerNorm params: static slices of the single (8,128) slab ---
    b_qkv = p_ref[0:1, 0:3 * H]      # (1, 96)
    b_out = p_ref[1:2, 0:H]
    b_ff1 = p_ref[2:3, 0:FF]
    b_ff2 = p_ref[3:4, 0:H]
    ln1_g = p_ref[4:5, 0:H]
    ln1_b = p_ref[5:6, 0:H]
    ln2_g = p_ref[6:7, 0:H]
    ln2_b = p_ref[7:8, 0:H]

    scale = 1.0 / math.sqrt(DH)

    # ---- fused QKV projection: one (B*S, H) @ (H, 3H) matmul ----
    qkv = jnp.dot(xf, w_ref[0:H, _W_QKV_OFF:_W_QKV_OFF + 3 * H],
                  preferred_element_type=jnp.float32) + b_qkv        # (B*S, 3H)
    q = qkv[:, 0 * H:1 * H].reshape(B, S, H)
    k = qkv[:, 1 * H:2 * H].reshape(B, S, H)
    v = qkv[:, 2 * H:3 * H].reshape(B, S, H)

    # ---- per-head attention (non-causal), single leading batch dim b ----
    heads = []
    for h in range(NH):                            # static unroll, NH=4
        lo = h * DH
        qh = q[:, :, lo:lo + DH]                   # (B, S, DH)
        kh = k[:, :, lo:lo + DH]
        vh = v[:, :, lo:lo + DH]
        s = jnp.einsum("bqd,bkd->bqk", qh, kh,
                       preferred_element_type=jnp.float32) * scale   # (B, S, S)
        p = jax.nn.softmax(s, axis=-1)
        heads.append(jnp.einsum("bqk,bkd->bqd", p, vh,
                                preferred_element_type=jnp.float32)) # (B, S, DH)

    # ---- concat heads along lanes + single output projection ----
    o = jnp.concatenate(heads, axis=-1).reshape(B * S, H)            # (B*S, H)
    attn = jnp.dot(o, w_ref[0:H, _W_OUT_OFF:_W_OUT_OFF + H],
                   preferred_element_type=jnp.float32) + b_out

    # ---- residual + LN1 (all elementwise math stays f32: v5e-safe) ----
    x1 = _layernorm(attn + xf, ln1_g, ln1_b)

    # ---- feed-forward (Linear -> ReLU -> Linear) + residual + LN2 ----
    h1 = jnp.maximum(
        jnp.dot(x1, w_ref[0:H, _W_FF1_OFF:_W_FF1_OFF + FF],
                preferred_element_type=jnp.float32) + b_ff1, 0.0)
    ff = jnp.dot(h1, w_ref[0:FF, _W_FF2_OFF:_W_FF2_OFF + H],
                 preferred_element_type=jnp.float32) + b_ff2
    x2 = _layernorm(ff + x1, ln2_g, ln2_b)

    # 2-D store, no in-kernel reshape.
    y_ref[...] = x2


# ----------------------------- wrapper ---------------------------------------
@jax.jit
def encoder_block(x, params):
    (w_qkv, b_qkv, w_out, b_out, w_ff1, b_ff1, w_ff2, b_ff2,
     ln1_g, ln1_b, ln2_g, ln2_b) = params

    # ---- pack parameters into TWO HBM slabs (2 DMAs instead of 10) ----
    # In a real model this packing is done once at parameter-load time.
    w_slab = jnp.zeros((FF, _W_COLS), jnp.float32)
    w_slab = w_slab.at[:H, _W_QKV_OFF:_W_QKV_OFF + 3 * H].set(w_qkv)
    w_slab = w_slab.at[:H, _W_OUT_OFF:_W_OUT_OFF + H].set(w_out)
    w_slab = w_slab.at[:H, _W_FF1_OFF:_W_FF1_OFF + FF].set(w_ff1)
    w_slab = w_slab.at[:FF, _W_FF2_OFF:_W_FF2_OFF + H].set(w_ff2)

    p_slab = jnp.zeros((8, 128), jnp.float32)     # exactly one (8,128) f32 tile
    p_slab = p_slab.at[0, 0:3 * H].set(b_qkv)
    p_slab = p_slab.at[1, 0:H].set(b_out)
    p_slab = p_slab.at[2, 0:FF].set(b_ff1)
    p_slab = p_slab.at[3, 0:H].set(b_ff2)
    p_slab = p_slab.at[4, 0:H].set(ln1_g)
    p_slab = p_slab.at[5, 0:H].set(ln1_b)
    p_slab = p_slab.at[6, 0:H].set(ln2_g)
    p_slab = p_slab.at[7, 0:H].set(ln2_b)

    flops = (2 * B * S * H * 3 * H            # QKV
             + 2 * 2 * B * NH * S * S * DH    # scores + PV
             + 2 * B * S * H * H              # out projection
             + 2 * B * S * H * FF * 2)        # FF1 + FF2
    transcendentals = B * NH * S * S + 2 * B * S
    bytes_accessed = 4 * (2 * B * S * H + FF * _W_COLS + 8 * 128)

    vmem = pl.BlockSpec(memory_space=pltpu.MemorySpace.VMEM)

    y2d = pl.pallas_call(
        encoder_block_kernel,
        out_shape=jax.ShapeDtypeStruct((B * S, H), jnp.float32),
        in_specs=[vmem, vmem, vmem],          # whole arrays, no grid/pipeline
        out_specs=vmem,
        cost_estimate=pl.CostEstimate(
            flops=flops,
            transcendentals=transcendentals,
            bytes_accessed=bytes_accessed),
    )(x, w_slab, p_slab)
    return y2d.reshape(B, S, H)               # free reshape outside the kernel


# -------------------------- pure-JAX reference --------------------------------
def reference(x, params):
    (w_qkv, b_qkv, w_out, b_out, w_ff1, b_ff1, w_ff2, b_ff2,
     ln1_g, ln1_b, ln2_g, ln2_b) = params

    def ln(v, g, b):
        mu = v.mean(-1, keepdims=True)
        var = ((v - mu) ** 2).mean(-1, keepdims=True)
        return (v - mu) / jnp.sqrt(var + LN_EPS) * g + b

    qkv = x @ w_qkv + b_qkv
    q, k, v = qkv[..., :H], qkv[..., H:2 * H], qkv[..., 2 * H:]

    def split(t):  # (B, S, H) -> (B, NH, S, DH)
        return t.reshape(B, S, NH, DH).transpose(0, 2, 1, 3)

    qh, kh, vh = split(q), split(k), split(v)
    s = jnp.einsum("bhqd,bhkd->bhqk", qh, kh) / math.sqrt(DH)
    p = jax.nn.softmax(s, -1)
    o = jnp.einsum("bhqk,bhkd->bhqd", p, vh)
    o = o.transpose(0, 2, 1, 3).reshape(B, S, H)
    a = o @ w_out + b_out
    x1 = ln(a + x, ln1_g, ln1_b)
    ffo = jnp.maximum(x1 @ w_ff1 + b_ff1, 0.0) @ w_ff2 + b_ff2
    x2 = ln(ffo + x1, ln2_g, ln2_b)
    return x2


# ----------------------------- main ------------------------------------------
if __name__ == "__main__":
    key = jax.random.PRNGKey(0)
    ks = jax.random.split(key, 9)

    def init(k, shape, fan_in):
        bound = 1.0 / math.sqrt(fan_in)
        return jax.random.uniform(k, shape, jnp.float32, -bound, bound)

    x = jax.random.normal(ks[0], (B, S, H), jnp.float32)

    params = (
        init(ks[1], (H, 3 * H), H),      # w_qkv (stacked [q|k|v], y = x @ W)
        init(ks[2], (3 * H,), H),        # b_qkv
        init(ks[3], (H, H), H),          # w_out
        init(ks[4], (H,), H),            # b_out
        init(ks[5], (H, FF), H),         # w_ff1
        init(ks[6], (FF,), H),           # b_ff1
        init(ks[7], (FF, H), FF),        # w_ff2
        init(ks[8], (H,), FF),           # b_ff2
        jnp.ones((H,), jnp.float32),     # lnorm1 gamma
        jnp.zeros((H,), jnp.float32),    # lnorm1 beta
        jnp.ones((H,), jnp.float32),     # lnorm2 gamma
        jnp.zeros((H,), jnp.float32),    # lnorm2 beta
    )

    y = encoder_block(x, params)
    jax.block_until_ready(y)

    y_ref = reference(x, params)
    assert jnp.allclose(y, y_ref, atol=1e-4, rtol=1e-4), "output mismatch"

    # Dropout (p=0) and weight_norm=False are identities in this forward.
    print("KERNEL_OK")
</pallas_src>

<mosaic_0001>
module attributes {stable_mosaic.version = 11 : i64} {
  func.func @encoder_block_kernel(%arg0: memref<2x8x32xf32, #tpu.memory_space<vmem>>, %arg1: memref<64x512xf32, #tpu.memory_space<vmem>>, %arg2: memref<8x128xf32, #tpu.memory_space<vmem>>, %arg3: memref<16x32xf32, #tpu.memory_space<vmem>>) attributes {dimension_semantics = [], scalar_prefetch = 0 : i64, scratch_operands = 0 : i64, tpu.core_type = #tpu.core_type<tc>} {
    %c0 = arith.constant 0 : index
    %c0_0 = arith.constant 0 : index
    %c0_1 = arith.constant 0 : index
    %0 = vector.load %arg0[%c0, %c0_0, %c0_1] : memref<2x8x32xf32, #tpu.memory_space<vmem>>, vector<2x8x32xf32>
    %1 = vector.shape_cast %0 : vector<2x8x32xf32> to vector<16x32xf32>
    %c0_2 = arith.constant 0 : index
    %c0_3 = arith.constant 0 : index
    %2 = vector.load %arg2[%c0_2, %c0_3] : memref<8x128xf32, #tpu.memory_space<vmem>>, vector<1x96xf32>
    %c1 = arith.constant 1 : index
    %c0_4 = arith.constant 0 : index
    %3 = vector.load %arg2[%c1, %c0_4] : memref<8x128xf32, #tpu.memory_space<vmem>>, vector<1x32xf32>
    %c2 = arith.constant 2 : index
    %c0_5 = arith.constant 0 : index
    %4 = vector.load %arg2[%c2, %c0_5] : memref<8x128xf32, #tpu.memory_space<vmem>>, vector<1x64xf32>
    %c3 = arith.constant 3 : index
    %c0_6 = arith.constant 0 : index
    %5 = vector.load %arg2[%c3, %c0_6] : memref<8x128xf32, #tpu.memory_space<vmem>>, vector<1x32xf32>
    %c4 = arith.constant 4 : index
    %c0_7 = arith.constant 0 : index
    %6 = vector.load %arg2[%c4, %c0_7] : memref<8x128xf32, #tpu.memory_space<vmem>>, vector<1x32xf32>
    %c5 = arith.constant 5 : index
    %c0_8 = arith.constant 0 : index
    %7 = vector.load %arg2[%c5, %c0_8] : memref<8x128xf32, #tpu.memory_space<vmem>>, vector<1x32xf32>
    %c6 = arith.constant 6 : index
    %c0_9 = arith.constant 0 : index
    %8 = vector.load %arg2[%c6, %c0_9] : memref<8x128xf32, #tpu.memory_space<vmem>>, vector<1x32xf32>
    %c7 = arith.constant 7 : index
    %c0_10 = arith.constant 0 : index
    %9 = vector.load %arg2[%c7, %c0_10] : memref<8x128xf32, #tpu.memory_space<vmem>>, vector<1x32xf32>
    %c0_11 = arith.constant 0 : index
    %c0_12 = arith.constant 0 : index
    %10 = vector.load %arg1[%c0_11, %c0_12] : memref<64x512xf32, #tpu.memory_space<vmem>>, vector<32x96xf32>
    %cst = arith.constant dense<0.000000e+00> : vector<16x96xf32>
    %11 = tpu.matmul %1, %10, %cst {dimension_numbers = #tpu.dot_dimension_numbers<[1], [0], [0], [1], [0, 0, 1, 1], [], []>} : vector<16x32xf32>, vector<32x96xf32>, vector<16x96xf32> -> vector<16x96xf32>
    %12 = vector.broadcast %2 : vector<1x96xf32> to vector<16x96xf32>
    %13 = arith.addf %11, %12 : vector<16x96xf32>
    %14 = vector.extract_strided_slice %13 {offsets = [0, 0], sizes = [16, 32], strides = [1, 1]} : vector<16x96xf32> to vector<16x32xf32>
    %15 = vector.shape_cast %14 : vector<16x32xf32> to vector<2x8x32xf32>
    %16 = vector.extract_strided_slice %13 {offsets = [0, 32], sizes = [16, 32], strides = [1, 1]} : vector<16x96xf32> to vector<16x32xf32>
    %17 = vector.shape_cast %16 : vector<16x32xf32> to vector<2x8x32xf32>
    %18 = vector.extract_strided_slice %13 {offsets = [0, 64], sizes = [16, 32], strides = [1, 1]} : vector<16x96xf32> to vector<16x32xf32>
    %19 = vector.shape_cast %18 : vector<16x32xf32> to vector<2x8x32xf32>
    %20 = vector.extract_strided_slice %15 {offsets = [0, 0, 0], sizes = [2, 8, 8], strides = [1, 1, 1]} : vector<2x8x32xf32> to vector<2x8x8xf32>
    %21 = vector.extract_strided_slice %17 {offsets = [0, 0, 0], sizes = [2, 8, 8], strides = [1, 1, 1]} : vector<2x8x32xf32> to vector<2x8x8xf32>
    %22 = vector.extract_strided_slice %19 {offsets = [0, 0, 0], sizes = [2, 8, 8], strides = [1, 1, 1]} : vector<2x8x32xf32> to vector<2x8x8xf32>
    "tpu.trace_start"() <{level = 10 : i32, message = "bqd,bkd->bqk"}> : () -> ()
    %cst_13 = arith.constant dense<0.000000e+00> : vector<2x8x8xf32>
    %23 = tpu.matmul %20, %21, %cst_13 {dimension_numbers = #tpu.dot_dimension_numbers<[2], [2], [1], [1], [0, 0, 0, 1, 1, 1], [0], [0]>} : vector<2x8x8xf32>, vector<2x8x8xf32>, vector<2x8x8xf32> -> vector<2x8x8xf32>
    "tpu.trace_stop"() : () -> ()
    %cst_14 = arith.constant 0.353553385 : f32
    %24 = vector.broadcast %cst_14 : f32 to vector<2x8x8xf32>
    %25 = arith.mulf %23, %24 : vector<2x8x8xf32>
    %cst_15 = arith.constant dense<0xFF800000> : vector<2x8xf32>
    %26 = vector.multi_reduction <maximumf>, %25, %cst_15 [2] : vector<2x8x8xf32> to vector<2x8xf32>
    %cst_16 = arith.constant 0xFF800000 : f32
    %27 = vector.broadcast %cst_16 : f32 to vector<2x8xf32>
    %28 = arith.maximumf %27, %26 : vector<2x8xf32>
    %29 = vector.shape_cast %28 : vector<2x8xf32> to vector<2x8x1xf32>
    %30 = vector.broadcast %29 : vector<2x8x1xf32> to vector<2x8x8xf32>
    %31 = arith.subf %25, %30 : vector<2x8x8xf32>
    %32 = math.exp %31 : vector<2x8x8xf32>
    %cst_17 = arith.constant dense<0.000000e+00> : vector<2x8xf32>
    %33 = vector.multi_reduction <add>, %32, %cst_17 [2] : vector<2x8x8xf32> to vector<2x8xf32>
    %34 = vector.shape_cast %33 : vector<2x8xf32> to vector<2x8x1xf32>
    %35 = vector.broadcast %34 : vector<2x8x1xf32> to vector<2x8x8xf32>
    %36 = arith.divf %32, %35 : vector<2x8x8xf32>
    "tpu.trace_start"() <{level = 10 : i32, message = "bqk,bkd->bqd"}> : () -> ()
    %cst_18 = arith.constant dense<0.000000e+00> : vector<2x8x8xf32>
    %37 = tpu.matmul %36, %22, %cst_18 {dimension_numbers = #tpu.dot_dimension_numbers<[2], [1], [1], [2], [0, 0, 0, 1, 1, 2], [0], [0]>} : vector<2x8x8xf32>, vector<2x8x8xf32>, vector<2x8x8xf32> -> vector<2x8x8xf32>
    "tpu.trace_stop"() : () -> ()
    %38 = vector.extract_strided_slice %15 {offsets = [0, 0, 8], sizes = [2, 8, 8], strides = [1, 1, 1]} : vector<2x8x32xf32> to vector<2x8x8xf32>
    %39 = vector.extract_strided_slice %17 {offsets = [0, 0, 8], sizes = [2, 8, 8], strides = [1, 1, 1]} : vector<2x8x32xf32> to vector<2x8x8xf32>
    %40 = vector.extract_strided_slice %19 {offsets = [0, 0, 8], sizes = [2, 8, 8], strides = [1, 1, 1]} : vector<2x8x32xf32> to vector<2x8x8xf32>
    "tpu.trace_start"() <{level = 10 : i32, message = "bqd,bkd->bqk"}> : () -> ()
    %cst_19 = arith.constant dense<0.000000e+00> : vector<2x8x8xf32>
    %41 = tpu.matmul %38, %39, %cst_19 {dimension_numbers = #tpu.dot_dimension_numbers<[2], [2], [1], [1], [0, 0, 0, 1, 1, 1], [0], [0]>} : vector<2x8x8xf32>, vector<2x8x8xf32>, vector<2x8x8xf32> -> vector<2x8x8xf32>
    "tpu.trace_stop"() : () -> ()
    %cst_20 = arith.constant 0.353553385 : f32
    %42 = vector.broadcast %cst_20 : f32 to vector<2x8x8xf32>
    %43 = arith.mulf %41, %42 : vector<2x8x8xf32>
    %cst_21 = arith.constant dense<0xFF800000> : vector<2x8xf32>
    %44 = vector.multi_reduction <maximumf>, %43, %cst_21 [2] : vector<2x8x8xf32> to vector<2x8xf32>
    %cst_22 = arith.constant 0xFF800000 : f32
    %45 = vector.broadcast %cst_22 : f32 to vector<2x8xf32>
    %46 = arith.maximumf %45, %44 : vector<2x8xf32>
    %47 = vector.shape_cast %46 : vector<2x8xf32> to vector<2x8x1xf32>
    %48 = vector.broadcast %47 : vector<2x8x1xf32> to vector<2x8x8xf32>
    %49 = arith.subf %43, %48 : vector<2x8x8xf32>
    %50 = math.exp %49 : vector<2x8x8xf32>
    %cst_23 = arith.constant dense<0.000000e+00> : vector<2x8xf32>
    %51 = vector.multi_reduction <add>, %50, %cst_23 [2] : vector<2x8x8xf32> to vector<2x8xf32>
    %52 = vector.shape_cast %51 : vector<2x8xf32> to vector<2x8x1xf32>
    %53 = vector.broadcast %52 : vector<2x8x1xf32> to vector<2x8x8xf32>
    %54 = arith.divf %50, %53 : vector<2x8x8xf32>
    "tpu.trace_start"() <{level = 10 : i32, message = "bqk,bkd->bqd"}> : () -> ()
    %cst_24 = arith.constant dense<0.000000e+00> : vector<2x8x8xf32>
    %55 = tpu.matmul %54, %40, %cst_24 {dimension_numbers = #tpu.dot_dimension_numbers<[2], [1], [1], [2], [0, 0, 0, 1, 1, 2], [0], [0]>} : vector<2x8x8xf32>, vector<2x8x8xf32>, vector<2x8x8xf32> -> vector<2x8x8xf32>
    "tpu.trace_stop"() : () -> ()
    %56 = vector.extract_strided_slice %15 {offsets = [0, 0, 16], sizes = [2, 8, 8], strides = [1, 1, 1]} : vector<2x8x32xf32> to vector<2x8x8xf32>
    %57 = vector.extract_strided_slice %17 {offsets = [0, 0, 16], sizes = [2, 8, 8], strides = [1, 1, 1]} : vector<2x8x32xf32> to vector<2x8x8xf32>
    %58 = vector.extract_strided_slice %19 {offsets = [0, 0, 16], sizes = [2, 8, 8], strides = [1, 1, 1]} : vector<2x8x32xf32> to vector<2x8x8xf32>
    "tpu.trace_start"() <{level = 10 : i32, message = "bqd,bkd->bqk"}> : () -> ()
    %cst_25 = arith.constant dense<0.000000e+00> : vector<2x8x8xf32>
    %59 = tpu.matmul %56, %57, %cst_25 {dimension_numbers = #tpu.dot_dimension_numbers<[2], [2], [1], [1], [0, 0, 0, 1, 1, 1], [0], [0]>} : vector<2x8x8xf32>, vector<2x8x8xf32>, vector<2x8x8xf32> -> vector<2x8x8xf32>
    "tpu.trace_stop"() : () -> ()
    %cst_26 = arith.constant 0.353553385 : f32
    %60 = vector.broadcast %cst_26 : f32 to vector<2x8x8xf32>
    %61 = arith.mulf %59, %60 : vector<2x8x8xf32>
    %cst_27 = arith.constant dense<0xFF800000> : vector<2x8xf32>
    %62 = vector.multi_reduction <maximumf>, %61, %cst_27 [2] : vector<2x8x8xf32> to vector<2x8xf32>
    %cst_28 = arith.constant 0xFF800000 : f32
    %63 = vector.broadcast %cst_28 : f32 to vector<2x8xf32>
    %64 = arith.maximumf %63, %62 : vector<2x8xf32>
    %65 = vector.shape_cast %64 : vector<2x8xf32> to vector<2x8x1xf32>
    %66 = vector.broadcast %65 : vector<2x8x1xf32> to vector<2x8x8xf32>
    %67 = arith.subf %61, %66 : vector<2x8x8xf32>
    %68 = math.exp %67 : vector<2x8x8xf32>
    %cst_29 = arith.constant dense<0.000000e+00> : vector<2x8xf32>
    %69 = vector.multi_reduction <add>, %68, %cst_29 [2] : vector<2x8x8xf32> to vector<2x8xf32>
    %70 = vector.shape_cast %69 : vector<2x8xf32> to vector<2x8x1xf32>
    %71 = vector.broadcast %70 : vector<2x8x1xf32> to vector<2x8x8xf32>
    %72 = arith.divf %68, %71 : vector<2x8x8xf32>
    "tpu.trace_start"() <{level = 10 : i32, message = "bqk,bkd->bqd"}> : () -> ()
    %cst_30 = arith.constant dense<0.000000e+00> : vector<2x8x8xf32>
    %73 = tpu.matmul %72, %58, %cst_30 {dimension_numbers = #tpu.dot_dimension_numbers<[2], [1], [1], [2], [0, 0, 0, 1, 1, 2], [0], [0]>} : vector<2x8x8xf32>, vector<2x8x8xf32>, vector<2x8x8xf32> -> vector<2x8x8xf32>
    "tpu.trace_stop"() : () -> ()
    %74 = vector.extract_strided_slice %15 {offsets = [0, 0, 24], sizes = [2, 8, 8], strides = [1, 1, 1]} : vector<2x8x32xf32> to vector<2x8x8xf32>
    %75 = vector.extract_strided_slice %17 {offsets = [0, 0, 24], sizes = [2, 8, 8], strides = [1, 1, 1]} : vector<2x8x32xf32> to vector<2x8x8xf32>
    %76 = vector.extract_strided_slice %19 {offsets = [0, 0, 24], sizes = [2, 8, 8], strides = [1, 1, 1]} : vector<2x8x32xf32> to vector<2x8x8xf32>
    "tpu.trace_start"() <{level = 10 : i32, message = "bqd,bkd->bqk"}> : () -> ()
    %cst_31 = arith.constant dense<0.000000e+00> : vector<2x8x8xf32>
    %77 = tpu.matmul %74, %75, %cst_31 {dimension_numbers = #tpu.dot_dimension_numbers<[2], [2], [1], [1], [0, 0, 0, 1, 1, 1], [0], [0]>} : vector<2x8x8xf32>, vector<2x8x8xf32>, vector<2x8x8xf32> -> vector<2x8x8xf32>
    "tpu.trace_stop"() : () -> ()
    %cst_32 = arith.constant 0.353553385 : f32
    %78 = vector.broadcast %cst_32 : f32 to vector<2x8x8xf32>
    %79 = arith.mulf %77, %78 : vector<2x8x8xf32>
    %cst_33 = arith.constant dense<0xFF800000> : vector<2x8xf32>
    %80 = vector.multi_reduction <maximumf>, %79, %cst_33 [2] : vector<2x8x8xf32> to vector<2x8xf32>
    %cst_34 = arith.constant 0xFF800000 : f32
    %81 = vector.broadcast %cst_34 : f32 to vector<2x8xf32>
    %82 = arith.maximumf %81, %80 : vector<2x8xf32>
    %83 = vector.shape_cast %82 : vector<2x8xf32> to vector<2x8x1xf32>
    %84 = vector.broadcast %83 : vector<2x8x1xf32> to vector<2x8x8xf32>
    %85 = arith.subf %79, %84 : vector<2x8x8xf32>
    %86 = math.exp %85 : vector<2x8x8xf32>
    %cst_35 = arith.constant dense<0.000000e+00> : vector<2x8xf32>
    %87 = vector.multi_reduction <add>, %86, %cst_35 [2] : vector<2x8x8xf32> to vector<2x8xf32>
    %88 = vector.shape_cast %87 : vector<2x8xf32> to vector<2x8x1xf32>
    %89 = vector.broadcast %88 : vector<2x8x1xf32> to vector<2x8x8xf32>
    %90 = arith.divf %86, %89 : vector<2x8x8xf32>
    "tpu.trace_start"() <{level = 10 : i32, message = "bqk,bkd->bqd"}> : () -> ()
    %cst_36 = arith.constant dense<0.000000e+00> : vector<2x8x8xf32>
    %91 = tpu.matmul %90, %76, %cst_36 {dimension_numbers = #tpu.dot_dimension_numbers<[2], [1], [1], [2], [0, 0, 0, 1, 1, 2], [0], [0]>} : vector<2x8x8xf32>, vector<2x8x8xf32>, vector<2x8x8xf32> -> vector<2x8x8xf32>
    "tpu.trace_stop"() : () -> ()
    %92 = tpu.concatenate %37, %55, %73, %91 in 2 : vector<2x8x8xf32>, vector<2x8x8xf32>, vector<2x8x8xf32>, vector<2x8x8xf32> -> vector<2x8x32xf32>
    %93 = vector.shape_cast %92 : vector<2x8x32xf32> to vector<16x32xf32>
    %c0_37 = arith.constant 0 : index
    %c128 = arith.constant 128 : index
    %94 = vector.load %arg1[%c0_37, %c128] : memref<64x512xf32, #tpu.memory_space<vmem>>, vector<32x32xf32>
    %cst_38 = arith.constant dense<0.000000e+00> : vector<16x32xf32>
    %95 = tpu.matmul %93, %94, %cst_38 {dimension_numbers = #tpu.dot_dimension_numbers<[1], [0], [0], [1], [0, 0, 1, 1], [], []>} : vector<16x32xf32>, vector<32x32xf32>, vector<16x32xf32> -> vector<16x32xf32>
    %96 = vector.broadcast %3 : vector<1x32xf32> to vector<16x32xf32>
    %97 = arith.addf %95, %96 : vector<16x32xf32>
    %98 = arith.addf %97, %1 : vector<16x32xf32>
    %cst_39 = arith.constant dense<0.000000e+00> : vector<16xf32>
    %99 = vector.multi_reduction <add>, %98, %cst_39 [1] : vector<16x32xf32> to vector<16xf32>
    %100 = vector.shape_cast %99 : vector<16xf32> to vector<16x1xf32>
    %cst_40 = arith.constant 3.200000e+01 : f32
    %101 = vector.broadcast %cst_40 : f32 to vector<16x1xf32>
    %102 = arith.divf %100, %101 : vector<16x1xf32>
    %103 = vector.broadcast %102 : vector<16x1xf32> to vector<16x32xf32>
    %104 = arith.subf %98, %103 : vector<16x32xf32>
    %105 = arith.mulf %104, %104 : vector<16x32xf32>
    %cst_41 = arith.constant dense<0.000000e+00> : vector<16xf32>
    %106 = vector.multi_reduction <add>, %105, %cst_41 [1] : vector<16x32xf32> to vector<16xf32>
    %107 = vector.shape_cast %106 : vector<16xf32> to vector<16x1xf32>
    %cst_42 = arith.constant 3.200000e+01 : f32
    %108 = vector.broadcast %cst_42 : f32 to vector<16x1xf32>
    %109 = arith.divf %107, %108 : vector<16x1xf32>
    %110 = vector.broadcast %102 : vector<16x1xf32> to vector<16x32xf32>
    %111 = arith.subf %98, %110 : vector<16x32xf32>
    %cst_43 = arith.constant 9.99999974E-6 : f32
    %112 = vector.broadcast %cst_43 : f32 to vector<16x1xf32>
    %113 = arith.addf %109, %112 : vector<16x1xf32>
    %114 = math.rsqrt %113 : vector<16x1xf32>
    %115 = vector.broadcast %114 : vector<16x1xf32> to vector<16x32xf32>
    %116 = arith.mulf %111, %115 : vector<16x32xf32>
    %117 = vector.broadcast %6 : vector<1x32xf32> to vector<16x32xf32>
    %118 = arith.mulf %116, %117 : vector<16x32xf32>
    %119 = vector.broadcast %7 : vector<1x32xf32> to vector<16x32xf32>
    %120 = arith.addf %118, %119 : vector<16x32xf32>
    %c0_44 = arith.constant 0 : index
    %c256 = arith.constant 256 : index
    %121 = vector.load %arg1[%c0_44, %c256] : memref<64x512xf32, #tpu.memory_space<vmem>>, vector<32x64xf32>
    %cst_45 = arith.constant dense<0.000000e+00> : vector<16x64xf32>
    %122 = tpu.matmul %120, %121, %cst_45 {dimension_numbers = #tpu.dot_dimension_numbers<[1], [0], [0], [1], [0, 0, 1, 1], [], []>} : vector<16x32xf32>, vector<32x64xf32>, vector<16x64xf32> -> vector<16x64xf32>
    %123 = vector.broadcast %4 : vector<1x64xf32> to vector<16x64xf32>
    %124 = arith.addf %122, %123 : vector<16x64xf32>
    %cst_46 = arith.constant 0.000000e+00 : f32
    %125 = vector.broadcast %cst_46 : f32 to vector<16x64xf32>
    %126 = arith.maximumf %124, %125 : vector<16x64xf32>
    %c0_47 = arith.constant 0 : index
    %c384 = arith.constant 384 : index
    %127 = vector.load %arg1[%c0_47, %c384] : memref<64x512xf32, #tpu.memory_space<vmem>>, vector<64x32xf32>
    %cst_48 = arith.constant dense<0.000000e+00> : vector<16x32xf32>
    %128 = tpu.matmul %126, %127, %cst_48 {dimension_numbers = #tpu.dot_dimension_numbers<[1], [0], [0], [1], [0, 0, 1, 1], [], []>} : vector<16x64xf32>, vector<64x32xf32>, vector<16x32xf32> -> vector<16x32xf32>
    %129 = vector.broadcast %5 : vector<1x32xf32> to vector<16x32xf32>
    %130 = arith.addf %128, %129 : vector<16x32xf32>
    %131 = arith.addf %130, %120 : vector<16x32xf32>
    %cst_49 = arith.constant dense<0.000000e+00> : vector<16xf32>
    %132 = vector.multi_reduction <add>, %131, %cst_49 [1] : vector<16x32xf32> to vector<16xf32>
    %133 = vector.shape_cast %132 : vector<16xf32> to vector<16x1xf32>
    %cst_50 = arith.constant 3.200000e+01 : f32
    %134 = vector.broadcast %cst_50 : f32 to vector<16x1xf32>
    %135 = arith.divf %133, %134 : vector<16x1xf32>
    %136 = vector.broadcast %135 : vector<16x1xf32> to vector<16x32xf32>
    %137 = arith.subf %131, %136 : vector<16x32xf32>
    %138 = arith.mulf %137, %137 : vector<16x32xf32>
    %cst_51 = arith.constant dense<0.000000e+00> : vector<16xf32>
    %139 = vector.multi_reduction <add>, %138, %cst_51 [1] : vector<16x32xf32> to vector<16xf32>
    %140 = vector.shape_cast %139 : vector<16xf32> to vector<16x1xf32>
    %cst_52 = arith.constant 3.200000e+01 : f32
    %141 = vector.broadcast %cst_52 : f32 to vector<16x1xf32>
    %142 = arith.divf %140, %141 : vector<16x1xf32>
    %143 = vector.broadcast %135 : vector<16x1xf32> to vector<16x32xf32>
    %144 = arith.subf %131, %143 : vector<16x32xf32>
    %cst_53 = arith.constant 9.99999974E-6 : f32
    %145 = vector.broadcast %cst_53 : f32 to vector<16x1xf32>
    %146 = arith.addf %142, %145 : vector<16x1xf32>
    %147 = math.rsqrt %146 : vector<16x1xf32>
    %148 = vector.broadcast %147 : vector<16x1xf32> to vector<16x32xf32>
    %149 = arith.mulf %144, %148 : vector<16x32xf32>
    %150 = vector.broadcast %8 : vector<1x32xf32> to vector<16x32xf32>
    %151 = arith.mulf %149, %150 : vector<16x32xf32>
    %152 = vector.broadcast %9 : vector<1x32xf32> to vector<16x32xf32>
    %153 = arith.addf %151, %152 : vector<16x32xf32>
    %c0_54 = arith.constant 0 : index
    %c0_55 = arith.constant 0 : index
    %154 = vector.load %arg3[%c0_54, %c0_55] : memref<16x32xf32, #tpu.memory_space<vmem>>, vector<16x32xf32>
    tpu.vector_store %arg3[%c0_54, %c0_55], %153 {strides = array<i32>} : memref<16x32xf32, #tpu.memory_space<vmem>>, vector<16x32xf32>,
    return
  }
}

</mosaic_0001>

<llo_original>
// kernel: encoder_block.1
$region0: #{encoder_block.1}
  #allocation0 [shape = 'u32[]', space=smem, size = 0x4, offset = 0x4, fixed_abs, tag = 'smem constant byte address 0x4 - core index']
  #allocation1 [shape = 'u32[72,128]{1,0:T(1,128)}', space=vmem, size = 0x9000, scoped, tag = 'internal scratch']
  %s0 = inlined_call_operand.vmem [shape: f32[2,8,32], index: 0, kind: input, shape index: {}]
  %s1 = inlined_call_operand.vmem [shape: f32[64,512], index: 1, kind: input, shape index: {}]
  %s2 = inlined_call_operand.vmem [shape: f32[8,128], index: 2, kind: input, shape index: {}]
  %s3 = inlined_call_operand.hbm [shape: f32[16,32], index: 3, kind: output, shape index: {}]
  %s4 = sld [smem:[#allocation0]]
  $region22: #{encoder_block.1} parent=0
    _
  %s6 = ssub.s32 1, %s4
  %s7 = scalar_select 0, %s6, %s4
  $region1: #{encoder_block.1} parent=0
    #allocation2 [shape = 'u8[8192]{0}', space=vmem, size = 0x2000, scoped, tag = 'output window, operand 0, single buffered']
    #allocation3 [shape = 's32[1]{0}', space=sflag, size = 0x4, scoped, tag = 'scoped memory for encoder_block.1']
    %8 = vsyncpa [#allocation3], 0
    // Predicated region
    $region2: #{encoder_block.1} parent=1 // pred_check
      _
    $region3: #{encoder_block.1} parent=1 // pred_check_branch
      %10 = sbr.rel (0) target = $region5
    $region4: #{encoder_block.1} parent=1 // pred_region
      _
    $region5: #{encoder_block.1} parent=1 // pred_fallthru
      _
    // Predicated region
    $region6: #{encoder_block.1} parent=1 // pred_check
      _
    $region7: #{encoder_block.1} parent=1 // pred_check_branch
      %12 = sbr.rel (0) target = $region9
    $region8: #{encoder_block.1} parent=1 // pred_region
      _
    $region9: #{encoder_block.1} parent=1 // pred_fallthru
      _
    // Predicated region
    $region10: #{encoder_block.1} parent=1 // pred_check
      _
    $region11: #{encoder_block.1} parent=1 // pred_check_branch
      %14 = sbr.rel (0) target = $region13
    $region12: #{encoder_block.1} parent=1 // pred_region
      _
    $region13: #{encoder_block.1} parent=1 // pred_fallthru
      _
    %v15 = vld [vmem:[%s0] sm:$0xff]
    %v16 = vld [vmem:[%s0 + $0x8] sm:$0xff]
    %v17 = vld [vmem:[%s2] sm:$0x1]
    %v18 = vld [vmem:[%s2 + $0x1] sm:$0x1]
    %v19 = vld [vmem:[%s2 + $0x2] sm:$0x1]
    %v20 = vld [vmem:[%s2 + $0x3] sm:$0x1]
    %v21 = vld [vmem:[%s2 + $0x4] sm:$0x1]
    %v22 = vld [vmem:[%s2 + $0x5] sm:$0x1]
    %v23 = vld [vmem:[%s2 + $0x6] sm:$0x1]
    %v24 = vld [vmem:[%s2 + $0x7] sm:$0x1]
    %v25 = vld [vmem:[%s1] sm:$0xff]
    %v26 = vld [vmem:[%s1 + $0x20] sm:$0xff]
    %v27 = vld [vmem:[%s1 + $0x40] sm:$0xff]
    %v28 = vld [vmem:[%s1 + $0x60] sm:$0xff]
    %v29 = vperm.slane %v17, 0
    %vm30 = vcmask 261120
    %v32 = vsel %vm30, %v15, 0
    %v35 = vsel %vm30, %v16, 0
    %37 = vmatpush.msra.mxu0 0.0
    %38 = vmatpush.msra.mxu0 0.0
    %39 = vmatpush.msra.mxu0 0.0
    %40 = vmatpush.msra.mxu0 0.0
    %41 = vmatpush.msra.mxu0 0.0
    %42 = vmatpush.msra.mxu0 0.0
    %43 = vmatpush.msra.mxu0 0.0
    %44 = vmatpush.msra.mxu0 0.0
    %45 = vmatpush.msra.mxu0 0.0
    %46 = vmatpush.msra.mxu0 0.0
    %47 = vmatpush.msra.mxu0 0.0
    %48 = vmatpush.msra.mxu0 0.0
    %49 = vmatpush.msra.mxu0 %v28
    %50 = vmatpush.msra.mxu0 %v27
    %51 = vmatpush.msra.mxu0 %v26
    %52 = vmatpush.msra.mxu0 %v25
    %53 = vmatmul.f32.gmra.mxu0 %v32
    %v54 = vpop.f32.mrf.mxu0
    %v55 = vadd.f32 %v29, %v54
    %56 = vmatmul.f32.gmra.mxu0 %v35
    %v57 = vpop.f32.mrf.mxu0
    %v58 = vadd.f32 %v29, %v57
    %59 = vdwg.mxu0
    %61 = vrot.lane.b32.xlu0 %v55, 96
    %v62 = vpop.permute.xlu0 %61
    %vm63 = vcmask 64512
    %v64 = vsel %vm63, %v55, 0
    %v66 = vsel %vm63, %v62, 0
    %68 = vmatpush.xpose.msra.mxu0 0.0
    %69 = vmatpush.xpose.msra.mxu0 0.0
    %70 = vmatpush.xpose.msra.mxu0 0.0
    %71 = vmatpush.xpose.msra.mxu0 0.0
    %72 = vmatpush.xpose.msra.mxu0 0.0
    %73 = vmatpush.xpose.msra.mxu0 0.0
    %74 = vmatpush.xpose.msra.mxu0 0.0
    %75 = vmatpush.xpose.msra.mxu0 0.0
    %76 = vmatpush.xpose.msra.mxu0 0.0
    %77 = vmatpush.xpose.msra.mxu0 0.0
    %78 = vmatpush.xpose.msra.mxu0 0.0
    %79 = vmatpush.xpose.msra.mxu0 0.0
    %80 = vmatpush.xpose.msra.mxu0 0.0
    %81 = vmatpush.xpose.msra.mxu0 0.0
    %82 = vmatpush.xpose.msra.mxu0 0.0
    %83 = vmatpush.xpose.msra.mxu0 %v66
    %84 = vmatmul.f32.gmra.mxu0 %v64
    %v85 = vpop.f32.mrf.mxu0
    %v86 = vadd.f32 0.0, %v85
    %87 = vdwg.mxu0
    %89 = vrot.lane.b32.xlu0 %v58, 96
    %v90 = vpop.permute.xlu0 %89
    %v91 = vsel %vm63, %v58, 0
    %v93 = vsel %vm63, %v90, 0
    %95 = vmatpush.xpose.msra.mxu0 0.0
    %96 = vmatpush.xpose.msra.mxu0 0.0
    %97 = vmatpush.xpose.msra.mxu0 0.0
    %98 = vmatpush.xpose.msra.mxu0 0.0
    %99 = vmatpush.xpose.msra.mxu0 0.0
    %100 = vmatpush.xpose.msra.mxu0 0.0
    %101 = vmatpush.xpose.msra.mxu0 0.0
    %102 = vmatpush.xpose.msra.mxu0 0.0
    %103 = vmatpush.xpose.msra.mxu0 0.0
    %104 = vmatpush.xpose.msra.mxu0 0.0
    %105 = vmatpush.xpose.msra.mxu0 0.0
    %106 = vmatpush.xpose.msra.mxu0 0.0
    %107 = vmatpush.xpose.msra.mxu0 0.0
    %108 = vmatpush.xpose.msra.mxu0 0.0
    %109 = vmatpush.xpose.msra.mxu0 0.0
    %110 = vmatpush.xpose.msra.mxu0 %v93
    %111 = vmatmul.f32.gmra.mxu0 %v91
    %v112 = vpop.f32.mrf.mxu0
    %v113 = vadd.f32 0.0, %v112
    %114 = vdwg.mxu0
    %v115 = vmul.f32 %v86, 0.35355338
    %v116 = vmul.f32 %v113, 0.35355338
    %v117 = vsel %vm63, %v115, -inf
    %118 = vmax.xlane.f32.xlu0 %v117
    %v119 = vpop.xlane.xlu0 %118
    %v120 = vsel %vm63, %v116, -inf
    %121 = vmax.xlane.f32.xlu0 %v120
    %v122 = vpop.xlane.xlu0 %121
    %v123 = vsub.f32 %v115, %v119
    %v124 = vsub.f32 %v116, %v122
    %v125 = vmul.f32 %v123, 1.442695
    %v126 = vpow.pop %v125
    %v127 = vmul.f32 %v124, 1.442695
    %v128 = vpow.pop %v127
    %v129 = vsel %vm63, %v126, 0.0
    %130 = vadd.xlane.f32.xlu0 %v129
    %v131 = vpop.xlane.xlu0 %130
    %v132 = vsel %vm63, %v128, 0.0
    %133 = vadd.xlane.f32.xlu0 %v132
    %v134 = vpop.xlane.xlu0 %133
    %v135 = vrcp.pop %v131
    %v136 = vmul.f32 %v131, %v135
    %v137 = vsub.f32 1.0, %v136
    %v138 = vmul.f32 %v135, %v137
    %v139 = vadd.f32 %v135, %v138
    %vm140 = vweird.f32 %v131
    %vm141 = vweird.f32 %v135
    %vm142 = vmor %vm140, %vm141
    %v143 = vsel %vm142, %v135, %v139
    %v144 = vand.u32 2147483647, %v131
    %vm145 = vcmp.eq.f32.partialorder %v144, 8.507059e+37
    %v146 = vand.u32 %v131, 2147483648
    %v147 = vor.u32 1.1754944e-38, %v146
    %v148 = vsel %vm145, %v147, %v143
    %v149 = vmul.f32 %v126, %v148
    %v150 = vrcp.pop %v134
    %v151 = vmul.f32 %v134, %v150
    %v152 = vsub.f32 1.0, %v151
    %v153 = vmul.f32 %v150, %v152
    %v154 = vadd.f32 %v150, %v153
    %vm155 = vweird.f32 %v134
    %vm156 = vweird.f32 %v150
    %vm157 = vmor %vm155, %vm156
    %v158 = vsel %vm157, %v150, %v154
    %v159 = vand.u32 2147483647, %v134
    %vm160 = vcmp.eq.f32.partialorder %v159, 8.507059e+37
    %v161 = vand.u32 %v134, 2147483648
    %v162 = vor.u32 1.1754944e-38, %v161
    %v163 = vsel %vm160, %v162, %v158
    %v164 = vmul.f32 %v128, %v163
    %165 = vrot.lane.b32.xlu0 %v55, 64
    %v166 = vpop.permute.xlu0 %165
    %v169 = vsel %vm63, %v149, 0
    %171 = vmatpush.msra.mxu0 0.0
    %172 = vmatpush.msra.mxu0 0.0
    %173 = vmatpush.msra.mxu0 0.0
    %174 = vmatpush.msra.mxu0 0.0
    %175 = vmatpush.msra.mxu0 0.0
    %176 = vmatpush.msra.mxu0 0.0
    %177 = vmatpush.msra.mxu0 0.0
    %178 = vmatpush.msra.mxu0 0.0
    %179 = vmatpush.msra.mxu0 0.0
    %180 = vmatpush.msra.mxu0 0.0
    %181 = vmatpush.msra.mxu0 0.0
    %182 = vmatpush.msra.mxu0 0.0
    %183 = vmatpush.msra.mxu0 0.0
    %184 = vmatpush.msra.mxu0 0.0
    %185 = vmatpush.msra.mxu0 0.0
    %186 = vmatpush.msra.mxu0 %v166
    %187 = vmatmul.f32.gmra.mxu0 %v169
    %v188 = vpop.f32.mrf.mxu0
    %v189 = vadd.f32 0.0, %v188
    %190 = vdwg.mxu0
    %191 = vrot.lane.b32.xlu0 %v58, 64
    %v192 = vpop.permute.xlu0 %191
    %v195 = vsel %vm63, %v164, 0
    %197 = vmatpush.msra.mxu0 0.0
    %198 = vmatpush.msra.mxu0 0.0
    %199 = vmatpush.msra.mxu0 0.0
    %200 = vmatpush.msra.mxu0 0.0
    %201 = vmatpush.msra.mxu0 0.0
    %202 = vmatpush.msra.mxu0 0.0
    %203 = vmatpush.msra.mxu0 0.0
    %204 = vmatpush.msra.mxu0 0.0
    %205 = vmatpush.msra.mxu0 0.0
    %206 = vmatpush.msra.mxu0 0.0
    %207 = vmatpush.msra.mxu0 0.0
    %208 = vmatpush.msra.mxu0 0.0
    %209 = vmatpush.msra.mxu0 0.0
    %210 = vmatpush.msra.mxu0 0.0
    %211 = vmatpush.msra.mxu0 0.0
    %212 = vmatpush.msra.mxu0 %v192
    %213 = vmatmul.f32.gmra.mxu0 %v195
    %v214 = vpop.f32.mrf.mxu0
    %v215 = vadd.f32 0.0, %v214
    %216 = vdwg.mxu0
    %217 = vrot.lane.b32.xlu0 %v55, 120
    %v218 = vpop.permute.xlu0 %217
    %219 = vrot.lane.b32.xlu0 %v55, 88
    %v220 = vpop.permute.xlu0 %219
    %v221 = vsel %vm63, %v218, 0
    %v223 = vsel %vm63, %v220, 0
    %225 = vmatpush.xpose.msra.mxu0 0.0
    %226 = vmatpush.xpose.msra.mxu0 0.0
    %227 = vmatpush.xpose.msra.mxu0 0.0
    %228 = vmatpush.xpose.msra.mxu0 0.0
    %229 = vmatpush.xpose.msra.mxu0 0.0
    %230 = vmatpush.xpose.msra.mxu0 0.0
    %231 = vmatpush.xpose.msra.mxu0 0.0
    %232 = vmatpush.xpose.msra.mxu0 0.0
    %233 = vmatpush.xpose.msra.mxu0 0.0
    %234 = vmatpush.xpose.msra.mxu0 0.0
    %235 = vmatpush.xpose.msra.mxu0 0.0
    %236 = vmatpush.xpose.msra.mxu0 0.0
    %237 = vmatpush.xpose.msra.mxu0 0.0
    %238 = vmatpush.xpose.msra.mxu0 0.0
    %239 = vmatpush.xpose.msra.mxu0 0.0
    %240 = vmatpush.xpose.msra.mxu0 %v223
    %241 = vmatmul.f32.gmra.mxu0 %v221
    %v242 = vpop.f32.mrf.mxu0
    %v243 = vadd.f32 0.0, %v242
    %244 = vdwg.mxu0
    %245 = vrot.lane.b32.xlu0 %v58, 120
    %v246 = vpop.permute.xlu0 %245
    %247 = vrot.lane.b32.xlu0 %v58, 88
    %v248 = vpop.permute.xlu0 %247
    %v249 = vsel %vm63, %v246, 0
    %v251 = vsel %vm63, %v248, 0
    %253 = vmatpush.xpose.msra.mxu0 0.0
    %254 = vmatpush.xpose.msra.mxu0 0.0
    %255 = vmatpush.xpose.msra.mxu0 0.0
    %256 = vmatpush.xpose.msra.mxu0 0.0
    %257 = vmatpush.xpose.msra.mxu0 0.0
    %258 = vmatpush.xpose.msra.mxu0 0.0
    %259 = vmatpush.xpose.msra.mxu0 0.0
    %260 = vmatpush.xpose.msra.mxu0 0.0
    %261 = vmatpush.xpose.msra.mxu0 0.0
    %262 = vmatpush.xpose.msra.mxu0 0.0
    %263 = vmatpush.xpose.msra.mxu0 0.0
    %264 = vmatpush.xpose.msra.mxu0 0.0
    %265 = vmatpush.xpose.msra.mxu0 0.0
    %266 = vmatpush.xpose.msra.mxu0 0.0
    %267 = vmatpush.xpose.msra.mxu0 0.0
    %268 = vmatpush.xpose.msra.mxu0 %v251
    %269 = vmatmul.f32.gmra.mxu0 %v249
    %v270 = vpop.f32.mrf.mxu0
    %v271 = vadd.f32 0.0, %v270
    %272 = vdwg.mxu0
    %v273 = vmul.f32 %v243, 0.35355338
    %v274 = vmul.f32 %v271, 0.35355338
    %v275 = vsel %vm63, %v273, -inf
    %276 = vmax.xlane.f32.xlu0 %v275
    %v277 = vpop.xlane.xlu0 %276
    %v278 = vsel %vm63, %v274, -inf
    %279 = vmax.xlane.f32.xlu0 %v278
    %v280 = vpop.xlane.xlu0 %279
    %v281 = vsub.f32 %v273, %v277
    %v282 = vsub.f32 %v274, %v280
    %v283 = vmul.f32 %v281, 1.442695
    %v284 = vpow.pop %v283
    %v285 = vmul.f32 %v282, 1.442695
    %v286 = vpow.pop %v285
    %v287 = vsel %vm63, %v284, 0.0
    %288 = vadd.xlane.f32.xlu0 %v287
    %v289 = vpop.xlane.xlu0 %288
    %v290 = vsel %vm63, %v286, 0.0
    %291 = vadd.xlane.f32.xlu0 %v290
    %v292 = vpop.xlane.xlu0 %291
    %v293 = vrcp.pop %v289
    %v294 = vmul.f32 %v289, %v293
    %v295 = vsub.f32 1.0, %v294
    %v296 = vmul.f32 %v293, %v295
    %v297 = vadd.f32 %v293, %v296
    %vm298 = vweird.f32 %v289
    %vm299 = vweird.f32 %v293
    %vm300 = vmor %vm298, %vm299
    %v301 = vsel %vm300, %v293, %v297
    %v302 = vand.u32 2147483647, %v289
    %vm303 = vcmp.eq.f32.partialorder %v302, 8.507059e+37
    %v304 = vand.u32 %v289, 2147483648
    %v305 = vor.u32 1.1754944e-38, %v304
    %v306 = vsel %vm303, %v305, %v301
    %v307 = vmul.f32 %v284, %v306
    %v308 = vrcp.pop %v292
    %v309 = vmul.f32 %v292, %v308
    %v310 = vsub.f32 1.0, %v309
    %v311 = vmul.f32 %v308, %v310
    %v312 = vadd.f32 %v308, %v311
    %vm313 = vweird.f32 %v292
    %vm314 = vweird.f32 %v308
    %vm315 = vmor %vm313, %vm314
    %v316 = vsel %vm315, %v308, %v312
    %v317 = vand.u32 2147483647, %v292
    %vm318 = vcmp.eq.f32.partialorder %v317, 8.507059e+37
    %v319 = vand.u32 %v292, 2147483648
    %v320 = vor.u32 1.1754944e-38, %v319
    %v321 = vsel %vm318, %v320, %v316
    %v322 = vmul.f32 %v286, %v321
    %323 = vrot.lane.b32.xlu0 %v55, 56
    %v324 = vpop.permute.xlu0 %323
    %v327 = vsel %vm63, %v307, 0
    %329 = vmatpush.msra.mxu0 0.0
    %330 = vmatpush.msra.mxu0 0.0
    %331 = vmatpush.msra.mxu0 0.0
    %332 = vmatpush.msra.mxu0 0.0
    %333 = vmatpush.msra.mxu0 0.0
    %334 = vmatpush.msra.mxu0 0.0
    %335 = vmatpush.msra.mxu0 0.0
    %336 = vmatpush.msra.mxu0 0.0
    %337 = vmatpush.msra.mxu0 0.0
    %338 = vmatpush.msra.mxu0 0.0
    %339 = vmatpush.msra.mxu0 0.0
    %340 = vmatpush.msra.mxu0 0.0
    %341 = vmatpush.msra.mxu0 0.0
    %342 = vmatpush.msra.mxu0 0.0
    %343 = vmatpush.msra.mxu0 0.0
    %344 = vmatpush.msra.mxu0 %v324
    %345 = vmatmul.f32.gmra.mxu0 %v327
    %v346 = vpop.f32.mrf.mxu0
    %v347 = vadd.f32 0.0, %v346
    %348 = vdwg.mxu0
    %349 = vrot.lane.b32.xlu0 %v58, 56
    %v350 = vpop.permute.xlu0 %349
    %v353 = vsel %vm63, %v322, 0
    %355 = vmatpush.msra.mxu0 0.0
    %356 = vmatpush.msra.mxu0 0.0
    %357 = vmatpush.msra.mxu0 0.0
    %358 = vmatpush.msra.mxu0 0.0
    %359 = vmatpush.msra.mxu0 0.0
    %360 = vmatpush.msra.mxu0 0.0
    %361 = vmatpush.msra.mxu0 0.0
    %362 = vmatpush.msra.mxu0 0.0
    %363 = vmatpush.msra.mxu0 0.0
    %364 = vmatpush.msra.mxu0 0.0
    %365 = vmatpush.msra.mxu0 0.0
    %366 = vmatpush.msra.mxu0 0.0
    %367 = vmatpush.msra.mxu0 0.0
    %368 = vmatpush.msra.mxu0 0.0
    %369 = vmatpush.msra.mxu0 0.0
    %370 = vmatpush.msra.mxu0 %v350
    %371 = vmatmul.f32.gmra.mxu0 %v353
    %v372 = vpop.f32.mrf.mxu0
    %v373 = vadd.f32 0.0, %v372
    %374 = vdwg.mxu0
    %375 = vrot.lane.b32.xlu0 %v55, 112
    %v376 = vpop.permute.xlu0 %375
    %377 = vrot.lane.b32.xlu0 %v55, 80
    %v378 = vpop.permute.xlu0 %377
    %v379 = vsel %vm63, %v376, 0
    %v381 = vsel %vm63, %v378, 0
    %383 = vmatpush.xpose.msra.mxu0 0.0
    %384 = vmatpush.xpose.msra.mxu0 0.0
    %385 = vmatpush.xpose.msra.mxu0 0.0
    %386 = vmatpush.xpose.msra.mxu0 0.0
    %387 = vmatpush.xpose.msra.mxu0 0.0
    %388 = vmatpush.xpose.msra.mxu0 0.0
    %389 = vmatpush.xpose.msra.mxu0 0.0
    %390 = vmatpush.xpose.msra.mxu0 0.0
    %391 = vmatpush.xpose.msra.mxu0 0.0
    %392 = vmatpush.xpose.msra.mxu0 0.0
    %393 = vmatpush.xpose.msra.mxu0 0.0
    %394 = vmatpush.xpose.msra.mxu0 0.0
    %395 = vmatpush.xpose.msra.mxu0 0.0
    %396 = vmatpush.xpose.msra.mxu0 0.0
    %397 = vmatpush.xpose.msra.mxu0 0.0
    %398 = vmatpush.xpose.msra.mxu0 %v381
    %399 = vmatmul.f32.gmra.mxu0 %v379
    %v400 = vpop.f32.mrf.mxu0
    %v401 = vadd.f32 0.0, %v400
    %402 = vdwg.mxu0
    %403 = vrot.lane.b32.xlu0 %v58, 112
    %v404 = vpop.permute.xlu0 %403
    %405 = vrot.lane.b32.xlu0 %v58, 80
    %v406 = vpop.permute.xlu0 %405
    %v407 = vsel %vm63, %v404, 0
    %v409 = vsel %vm63, %v406, 0
    %411 = vmatpush.xpose.msra.mxu0 0.0
    %412 = vmatpush.xpose.msra.mxu0 0.0
    %413 = vmatpush.xpose.msra.mxu0 0.0
    %414 = vmatpush.xpose.msra.mxu0 0.0
    %415 = vmatpush.xpose.msra.mxu0 0.0
    %416 = vmatpush.xpose.msra.mxu0 0.0
    %417 = vmatpush.xpose.msra.mxu0 0.0
    %418 = vmatpush.xpose.msra.mxu0 0.0
    %419 = vmatpush.xpose.msra.mxu0 0.0
    %420 = vmatpush.xpose.msra.mxu0 0.0
    %421 = vmatpush.xpose.msra.mxu0 0.0
    %422 = vmatpush.xpose.msra.mxu0 0.0
    %423 = vmatpush.xpose.msra.mxu0 0.0
    %424 = vmatpush.xpose.msra.mxu0 0.0
    %425 = vmatpush.xpose.msra.mxu0 0.0
    %426 = vmatpush.xpose.msra.mxu0 %v409
    %427 = vmatmul.f32.gmra.mxu0 %v407
    %v428 = vpop.f32.mrf.mxu0
    %v429 = vadd.f32 0.0, %v428
    %430 = vdwg.mxu0
    %v431 = vmul.f32 %v401, 0.35355338
    %v432 = vmul.f32 %v429, 0.35355338
    %v433 = vsel %vm63, %v431, -inf
    %434 = vmax.xlane.f32.xlu0 %v433
    %v435 = vpop.xlane.xlu0 %434
    %v436 = vsel %vm63, %v432, -inf
    %437 = vmax.xlane.f32.xlu0 %v436
    %v438 = vpop.xlane.xlu0 %437
    %v439 = vsub.f32 %v431, %v435
    %v440 = vsub.f32 %v432, %v438
    %v441 = vmul.f32 %v439, 1.442695
    %v442 = vpow.pop %v441
    %v443 = vmul.f32 %v440, 1.442695
    %v444 = vpow.pop %v443
    %v445 = vsel %vm63, %v442, 0.0
    %446 = vadd.xlane.f32.xlu0 %v445
    %v447 = vpop.xlane.xlu0 %446
    %v448 = vsel %vm63, %v444, 0.0
    %449 = vadd.xlane.f32.xlu0 %v448
    %v450 = vpop.xlane.xlu0 %449
    %v451 = vrcp.pop %v447
    %v452 = vmul.f32 %v447, %v451
    %v453 = vsub.f32 1.0, %v452
    %v454 = vmul.f32 %v451, %v453
    %v455 = vadd.f32 %v451, %v454
    %vm456 = vweird.f32 %v447
    %vm457 = vweird.f32 %v451
    %vm458 = vmor %vm456, %vm457
    %v459 = vsel %vm458, %v451, %v455
    %v460 = vand.u32 2147483647, %v447
    %vm461 = vcmp.eq.f32.partialorder %v460, 8.507059e+37
    %v462 = vand.u32 %v447, 2147483648
    %v463 = vor.u32 1.1754944e-38, %v462
    %v464 = vsel %vm461, %v463, %v459
    %v465 = vmul.f32 %v442, %v464
    %v466 = vrcp.pop %v450
    %v467 = vmul.f32 %v450, %v466
    %v468 = vsub.f32 1.0, %v467
    %v469 = vmul.f32 %v466, %v468
    %v470 = vadd.f32 %v466, %v469
    %vm471 = vweird.f32 %v450
    %vm472 = vweird.f32 %v466
    %vm473 = vmor %vm471, %vm472
    %v474 = vsel %vm473, %v466, %v470
    %v475 = vand.u32 2147483647, %v450
    %vm476 = vcmp.eq.f32.partialorder %v475, 8.507059e+37
    %v477 = vand.u32 %v450, 2147483648
    %v478 = vor.u32 1.1754944e-38, %v477
    %v479 = vsel %vm476, %v478, %v474
    %v480 = vmul.f32 %v444, %v479
    %481 = vrot.lane.b32.xlu0 %v55, 48
    %v482 = vpop.permute.xlu0 %481
    %v485 = vsel %vm63, %v465, 0
    %487 = vmatpush.msra.mxu0 0.0
    %488 = vmatpush.msra.mxu0 0.0
    %489 = vmatpush.msra.mxu0 0.0
    %490 = vmatpush.msra.mxu0 0.0
    %491 = vmatpush.msra.mxu0 0.0
    %492 = vmatpush.msra.mxu0 0.0
    %493 = vmatpush.msra.mxu0 0.0
    %494 = vmatpush.msra.mxu0 0.0
    %495 = vmatpush.msra.mxu0 0.0
    %496 = vmatpush.msra.mxu0 0.0
    %497 = vmatpush.msra.mxu0 0.0
    %498 = vmatpush.msra.mxu0 0.0
    %499 = vmatpush.msra.mxu0 0.0
    %500 = vmatpush.msra.mxu0 0.0
    %501 = vmatpush.msra.mxu0 0.0
    %502 = vmatpush.msra.mxu0 %v482
    %503 = vmatmul.f32.gmra.mxu0 %v485
    %v504 = vpop.f32.mrf.mxu0
    %v505 = vadd.f32 0.0, %v504
    %506 = vdwg.mxu0
    %507 = vrot.lane.b32.xlu0 %v58, 48
    %v508 = vpop.permute.xlu0 %507
    %v511 = vsel %vm63, %v480, 0
    %513 = vmatpush.msra.mxu0 0.0
    %514 = vmatpush.msra.mxu0 0.0
    %515 = vmatpush.msra.mxu0 0.0
    %516 = vmatpush.msra.mxu0 0.0
    %517 = vmatpush.msra.mxu0 0.0
    %518 = vmatpush.msra.mxu0 0.0
    %519 = vmatpush.msra.mxu0 0.0
    %520 = vmatpush.msra.mxu0 0.0
    %521 = vmatpush.msra.mxu0 0.0
    %522 = vmatpush.msra.mxu0 0.0
    %523 = vmatpush.msra.mxu0 0.0
    %524 = vmatpush.msra.mxu0 0.0
    %525 = vmatpush.msra.mxu0 0.0
    %526 = vmatpush.msra.mxu0 0.0
    %527 = vmatpush.msra.mxu0 0.0
    %528 = vmatpush.msra.mxu0 %v508
    %529 = vmatmul.f32.gmra.mxu0 %v511
    %v530 = vpop.f32.mrf.mxu0
    %v531 = vadd.f32 0.0, %v530
    %532 = vdwg.mxu0
    %533 = vrot.lane.b32.xlu0 %v55, 104
    %v534 = vpop.permute.xlu0 %533
    %535 = vrot.lane.b32.xlu0 %v55, 72
    %v536 = vpop.permute.xlu0 %535
    %v537 = vsel %vm63, %v534, 0
    %v539 = vsel %vm63, %v536, 0
    %541 = vmatpush.xpose.msra.mxu0 0.0
    %542 = vmatpush.xpose.msra.mxu0 0.0
    %543 = vmatpush.xpose.msra.mxu0 0.0
    %544 = vmatpush.xpose.msra.mxu0 0.0
    %545 = vmatpush.xpose.msra.mxu0 0.0
    %546 = vmatpush.xpose.msra.mxu0 0.0
    %547 = vmatpush.xpose.msra.mxu0 0.0
    %548 = vmatpush.xpose.msra.mxu0 0.0
    %549 = vmatpush.xpose.msra.mxu0 0.0
    %550 = vmatpush.xpose.msra.mxu0 0.0
    %551 = vmatpush.xpose.msra.mxu0 0.0
    %552 = vmatpush.xpose.msra.mxu0 0.0
    %553 = vmatpush.xpose.msra.mxu0 0.0
    %554 = vmatpush.xpose.msra.mxu0 0.0
    %555 = vmatpush.xpose.msra.mxu0 0.0
    %556 = vmatpush.xpose.msra.mxu0 %v539
    %557 = vmatmul.f32.gmra.mxu0 %v537
    %v558 = vpop.f32.mrf.mxu0
    %v559 = vadd.f32 0.0, %v558
    %560 = vdwg.mxu0
    %561 = vrot.lane.b32.xlu0 %v58, 104
    %v562 = vpop.permute.xlu0 %561
    %563 = vrot.lane.b32.xlu0 %v58, 72
    %v564 = vpop.permute.xlu0 %563
    %v565 = vsel %vm63, %v562, 0
    %v567 = vsel %vm63, %v564, 0
    %569 = vmatpush.xpose.msra.mxu0 0.0
    %570 = vmatpush.xpose.msra.mxu0 0.0
    %571 = vmatpush.xpose.msra.mxu0 0.0
    %572 = vmatpush.xpose.msra.mxu0 0.0
    %573 = vmatpush.xpose.msra.mxu0 0.0
    %574 = vmatpush.xpose.msra.mxu0 0.0
    %575 = vmatpush.xpose.msra.mxu0 0.0
    %576 = vmatpush.xpose.msra.mxu0 0.0
    %577 = vmatpush.xpose.msra.mxu0 0.0
    %578 = vmatpush.xpose.msra.mxu0 0.0
    %579 = vmatpush.xpose.msra.mxu0 0.0
    %580 = vmatpush.xpose.msra.mxu0 0.0
    %581 = vmatpush.xpose.msra.mxu0 0.0
    %582 = vmatpush.xpose.msra.mxu0 0.0
    %583 = vmatpush.xpose.msra.mxu0 0.0
    %584 = vmatpush.xpose.msra.mxu0 %v567
    %585 = vmatmul.f32.gmra.mxu0 %v565
    %v586 = vpop.f32.mrf.mxu0
    %v587 = vadd.f32 0.0, %v586
    %588 = vdwg.mxu0
    %v589 = vmul.f32 %v559, 0.35355338
    %v590 = vmul.f32 %v587, 0.35355338
    %v591 = vsel %vm63, %v589, -inf
    %592 = vmax.xlane.f32.xlu0 %v591
    %v593 = vpop.xlane.xlu0 %592
    %v594 = vsel %vm63, %v590, -inf
    %595 = vmax.xlane.f32.xlu0 %v594
    %v596 = vpop.xlane.xlu0 %595
    %v597 = vsub.f32 %v589, %v593
    %v598 = vsub.f32 %v590, %v596
    %v599 = vmul.f32 %v597, 1.442695
    %v600 = vpow.pop %v599
    %v601 = vmul.f32 %v598, 1.442695
    %v602 = vpow.pop %v601
    %v603 = vsel %vm63, %v600, 0.0
    %604 = vadd.xlane.f32.xlu0 %v603
    %v605 = vpop.xlane.xlu0 %604
    %v606 = vsel %vm63, %v602, 0.0
    %607 = vadd.xlane.f32.xlu0 %v606
    %v608 = vpop.xlane.xlu0 %607
    %v609 = vrcp.pop %v605
    %v610 = vmul.f32 %v605, %v609
    %v611 = vsub.f32 1.0, %v610
    %v612 = vmul.f32 %v609, %v611
    %v613 = vadd.f32 %v609, %v612
    %vm614 = vweird.f32 %v605
    %vm615 = vweird.f32 %v609
    %vm616 = vmor %vm614, %vm615
    %v617 = vsel %vm616, %v609, %v613
    %v618 = vand.u32 2147483647, %v605
    %vm619 = vcmp.eq.f32.partialorder %v618, 8.507059e+37
    %v620 = vand.u32 %v605, 2147483648
    %v621 = vor.u32 1.1754944e-38, %v620
    %v622 = vsel %vm619, %v621, %v617
    %v623 = vmul.f32 %v600, %v622
    %v624 = vrcp.pop %v608
    %v625 = vmul.f32 %v608, %v624
    %v626 = vsub.f32 1.0, %v625
    %v627 = vmul.f32 %v624, %v626
    %v628 = vadd.f32 %v624, %v627
    %vm629 = vweird.f32 %v608
    %vm630 = vweird.f32 %v624
    %vm631 = vmor %vm629, %vm630
    %v632 = vsel %vm631, %v624, %v628
    %v633 = vand.u32 2147483647, %v608
    %vm634 = vcmp.eq.f32.partialorder %v633, 8.507059e+37
    %v635 = vand.u32 %v608, 2147483648
    %v636 = vor.u32 1.1754944e-38, %v635
    %v637 = vsel %vm634, %v636, %v632
    %v638 = vmul.f32 %v602, %v637
    %639 = vrot.lane.b32.xlu0 %v55, 40
    %v640 = vpop.permute.xlu0 %639
    %v643 = vsel %vm63, %v623, 0
    %645 = vmatpush.msra.mxu0 0.0
    %646 = vmatpush.msra.mxu0 0.0
    %647 = vmatpush.msra.mxu0 0.0
    %648 = vmatpush.msra.mxu0 0.0
    %649 = vmatpush.msra.mxu0 0.0
    %650 = vmatpush.msra.mxu0 0.0
    %651 = vmatpush.msra.mxu0 0.0
    %652 = vmatpush.msra.mxu0 0.0
    %653 = vmatpush.msra.mxu0 0.0
    %654 = vmatpush.msra.mxu0 0.0
    %655 = vmatpush.msra.mxu0 0.0
    %656 = vmatpush.msra.mxu0 0.0
    %657 = vmatpush.msra.mxu0 0.0
    %658 = vmatpush.msra.mxu0 0.0
    %659 = vmatpush.msra.mxu0 0.0
    %660 = vmatpush.msra.mxu0 %v640
    %661 = vmatmul.f32.gmra.mxu0 %v643
    %v662 = vpop.f32.mrf.mxu0
    %v663 = vadd.f32 0.0, %v662
    %664 = vdwg.mxu0
    %665 = vrot.lane.b32.xlu0 %v58, 40
    %v666 = vpop.permute.xlu0 %665
    %v669 = vsel %vm63, %v638, 0
    %671 = vmatpush.msra.mxu0 0.0
    %672 = vmatpush.msra.mxu0 0.0
    %673 = vmatpush.msra.mxu0 0.0
    %674 = vmatpush.msra.mxu0 0.0
    %675 = vmatpush.msra.mxu0 0.0
    %676 = vmatpush.msra.mxu0 0.0
    %677 = vmatpush.msra.mxu0 0.0
    %678 = vmatpush.msra.mxu0 0.0
    %679 = vmatpush.msra.mxu0 0.0
    %680 = vmatpush.msra.mxu0 0.0
    %681 = vmatpush.msra.mxu0 0.0
    %682 = vmatpush.msra.mxu0 0.0
    %683 = vmatpush.msra.mxu0 0.0
    %684 = vmatpush.msra.mxu0 0.0
    %685 = vmatpush.msra.mxu0 0.0
    %686 = vmatpush.msra.mxu0 %v666
    %687 = vmatmul.f32.gmra.mxu0 %v669
    %v688 = vpop.f32.mrf.mxu0
    %v689 = vadd.f32 0.0, %v688
    %690 = vdwg.mxu0
    %693 = vrot.lane.b32.xlu0 %v347, 8
    %v694 = vpop.permute.xlu0 %693
    %695 = vrot.lane.b32.xlu0 %v373, 8
    %v696 = vpop.permute.xlu0 %695
    %701 = vrot.lane.b32.xlu0 %v505, 16
    %v702 = vpop.permute.xlu0 %701
    %703 = vrot.lane.b32.xlu0 %v531, 16
    %v704 = vpop.permute.xlu0 %703
    %709 = vrot.lane.b32.xlu0 %v663, 24
    %v710 = vpop.permute.xlu0 %709
    %711 = vrot.lane.b32.xlu0 %v689, 24
    %v712 = vpop.permute.xlu0 %711
    %v715 = vsel %vm63, %v189, %v694
    %v716 = vsel %vm63, %v215, %v696
    %vm717 = vcmask 130048
    %v718 = vsel %vm717, %v715, %v702
    %v719 = vsel %vm717, %v716, %v704
    %vm720 = vcmask 195584
    %v721 = vsel %vm720, %v718, %v710
    %v722 = vsel %vm720, %v719, %v712
    %v723 = vld [vmem:[%s1 + $0x8] sm:$0xff]
    %v724 = vld [vmem:[%s1 + $0x28] sm:$0xff]
    %v725 = vld [vmem:[%s1 + $0x48] sm:$0xff]
    %v726 = vld [vmem:[%s1 + $0x68] sm:$0xff]
    %v727 = vperm.slane %v18, 0
    %v729 = vsel %vm30, %v721, 0
    %v732 = vsel %vm30, %v722, 0
    %734 = vmatpush.msra.mxu0 0.0
    %735 = vmatpush.msra.mxu0 0.0
    %736 = vmatpush.msra.mxu0 0.0
    %737 = vmatpush.msra.mxu0 0.0
    %738 = vmatpush.msra.mxu0 0.0
    %739 = vmatpush.msra.mxu0 0.0
    %740 = vmatpush.msra.mxu0 0.0
    %741 = vmatpush.msra.mxu0 0.0
    %742 = vmatpush.msra.mxu0 0.0
    %743 = vmatpush.msra.mxu0 0.0
    %744 = vmatpush.msra.mxu0 0.0
    %745 = vmatpush.msra.mxu0 0.0
    %746 = vmatpush.msra.mxu0 %v726
    %747 = vmatpush.msra.mxu0 %v725
    %748 = vmatpush.msra.mxu0 %v724
    %749 = vmatpush.msra.mxu0 %v723
    %750 = vmatmul.f32.gmra.mxu0 %v729
    %v751 = vpop.f32.mrf.mxu0
    %v752 = vadd.f32 %v727, %v751
    %753 = vmatmul.f32.gmra.mxu0 %v732
    %v754 = vpop.f32.mrf.mxu0
    %v755 = vadd.f32 %v727, %v754
    %756 = vdwg.mxu0
    %v757 = vadd.f32 %v752, %v15
    %v758 = vadd.f32 %v755, %v16
    %v759 = vsel %vm30, %v757, 0.0
    %760 = vadd.xlane.f32.xlu0 %v759
    %v761 = vpop.xlane.xlu0 %760
    %v762 = vsel %vm30, %v758, 0.0
    %763 = vadd.xlane.f32.xlu0 %v762
    %v764 = vpop.xlane.xlu0 %763
    %v765 = vrcp.pop 32.0
    %v766 = vmul.f32 32.0, %v765
    %v767 = vsub.f32 1.0, %v766
    %v768 = vmul.f32 %v765, %v767
    %v769 = vadd.f32 %v765, %v768
    %vm770 = vweird.f32 %v765
    %v771 = vsel %vm770, %v765, %v769
    %v772 = vmul.f32 %v761, %v771
    %v773 = vmul.f32 %v764, %v771
    %v774 = vsub.f32 %v757, %v772
    %v775 = vsub.f32 %v758, %v773
    %v776 = vmul.f32 %v774, %v774
    %v777 = vmul.f32 %v775, %v775
    %v778 = vsel %vm30, %v776, 0.0
    %779 = vadd.xlane.f32.xlu0 %v778
    %v780 = vpop.xlane.xlu0 %779
    %v781 = vsel %vm30, %v777, 0.0
    %782 = vadd.xlane.f32.xlu0 %v781
    %v783 = vpop.xlane.xlu0 %782
    %v784 = vmul.f32 %v780, %v771
    %v785 = vmul.f32 %v783, %v771
    %v786 = vadd.f32 %v784, 1e-05
    %v787 = vadd.f32 %v785, 1e-05
    %v788 = vrsqrt.pop %v786
    %v789 = vmul.f32 %v788, %v786
    %v790 = vmul.f32 %v789, %v788
    %v791 = vmul.f32 0.5, %v790
    %v792 = vsub.f32 1.5, %v791
    %v793 = vmul.f32 %v788, %v792
    %vm794 = vweird.f32 %v786
    %vm795 = vweird.f32 %v788
    %vm796 = vmor %vm794, %vm795
    %v797 = vsel %vm796, %v788, %v793
    %v798 = vrsqrt.pop %v787
    %v799 = vmul.f32 %v798, %v787
    %v800 = vmul.f32 %v799, %v798
    %v801 = vmul.f32 0.5, %v800
    %v802 = vsub.f32 1.5, %v801
    %v803 = vmul.f32 %v798, %v802
    %vm804 = vweird.f32 %v787
    %vm805 = vweird.f32 %v798
    %vm806 = vmor %vm804, %vm805
    %v807 = vsel %vm806, %v798, %v803
    %v808 = vmul.f32 %v774, %v797
    %v809 = vmul.f32 %v775, %v807
    %v810 = vperm.slane %v21, 0
    %v811 = vmul.f32 %v808, %v810
    %v812 = vmul.f32 %v809, %v810
    %v813 = vperm.slane %v22, 0
    %v814 = vadd.f32 %v811, %v813
    %v815 = vadd.f32 %v812, %v813
    %v816 = vld [vmem:[%s1 + $0x10] sm:$0xff]
    %v817 = vld [vmem:[%s1 + $0x30] sm:$0xff]
    %v818 = vld [vmem:[%s1 + $0x50] sm:$0xff]
    %v819 = vld [vmem:[%s1 + $0x70] sm:$0xff]
    %v820 = vperm.slane %v19, 0
    %v822 = vsel %vm30, %v814, 0
    %v825 = vsel %vm30, %v815, 0
    %827 = vmatpush.msra.mxu0 0.0
    %828 = vmatpush.msra.mxu0 0.0
    %829 = vmatpush.msra.mxu0 0.0
    %830 = vmatpush.msra.mxu0 0.0
    %831 = vmatpush.msra.mxu0 0.0
    %832 = vmatpush.msra.mxu0 0.0
    %833 = vmatpush.msra.mxu0 0.0
    %834 = vmatpush.msra.mxu0 0.0
    %835 = vmatpush.msra.mxu0 0.0
    %836 = vmatpush.msra.mxu0 0.0
    %837 = vmatpush.msra.mxu0 0.0
    %838 = vmatpush.msra.mxu0 0.0
    %839 = vmatpush.msra.mxu0 %v819
    %840 = vmatpush.msra.mxu0 %v818
    %841 = vmatpush.msra.mxu0 %v817
    %842 = vmatpush.msra.mxu0 %v816
    %843 = vmatmul.f32.gmra.mxu0 %v822
    %v844 = vpop.f32.mrf.mxu0
    %v845 = vadd.f32 %v820, %v844
    %846 = vmatmul.f32.gmra.mxu0 %v825
    %v847 = vpop.f32.mrf.mxu0
    %v848 = vadd.f32 %v820, %v847
    %849 = vdwg.mxu0
    %v850 = vmax.f32 %v845, 0.0
    %v851 = vmax.f32 %v848, 0.0
    %v852 = vld [vmem:[%s1 + $0x18] sm:$0xff]
    %v853 = vld [vmem:[%s1 + $0x38] sm:$0xff]
    %v854 = vld [vmem:[%s1 + $0x58] sm:$0xff]
    %v855 = vld [vmem:[%s1 + $0x78] sm:$0xff]
    %v856 = vld [vmem:[%s1 + $0x98] sm:$0xff]
    %v857 = vld [vmem:[%s1 + $0xb8] sm:$0xff]
    %v858 = vld [vmem:[%s1 + $0xd8] sm:$0xff]
    %v859 = vld [vmem:[%s1 + $0xf8] sm:$0xff]
    %v860 = vperm.slane %v20, 0
    %vm861 = vcmask 523264
    %v863 = vsel %vm861, %v850, 0
    %v866 = vsel %vm861, %v851, 0
    %868 = vmatpush.msra.mxu0 0.0
    %869 = vmatpush.msra.mxu0 0.0
    %870 = vmatpush.msra.mxu0 0.0
    %871 = vmatpush.msra.mxu0 0.0
    %872 = vmatpush.msra.mxu0 0.0
    %873 = vmatpush.msra.mxu0 0.0
    %874 = vmatpush.msra.mxu0 0.0
    %875 = vmatpush.msra.mxu0 0.0
    %876 = vmatpush.msra.mxu0 %v859
    %877 = vmatpush.msra.mxu0 %v858
    %878 = vmatpush.msra.mxu0 %v857
    %879 = vmatpush.msra.mxu0 %v856
    %880 = vmatpush.msra.mxu0 %v855
    %881 = vmatpush.msra.mxu0 %v854
    %882 = vmatpush.msra.mxu0 %v853
    %883 = vmatpush.msra.mxu0 %v852
    %884 = vmatmul.f32.gmra.mxu0 %v863
    %v885 = vpop.f32.mrf.mxu0
    %v886 = vadd.f32 %v860, %v885
    %887 = vmatmul.f32.gmra.mxu0 %v866
    %v888 = vpop.f32.mrf.mxu0
    %v889 = vadd.f32 %v860, %v888
    %890 = vdwg.mxu0
    %v891 = vadd.f32 %v886, %v814
    %v892 = vadd.f32 %v889, %v815
    %v893 = vsel %vm30, %v891, 0.0
    %894 = vadd.xlane.f32.xlu0 %v893
    %v895 = vpop.xlane.xlu0 %894
    %v896 = vsel %vm30, %v892, 0.0
    %897 = vadd.xlane.f32.xlu0 %v896
    %v898 = vpop.xlane.xlu0 %897
    %v899 = vmul.f32 %v895, %v771
    %v900 = vmul.f32 %v898, %v771
    %v901 = vsub.f32 %v891, %v899
    %v902 = vsub.f32 %v892, %v900
    %v903 = vmul.f32 %v901, %v901
    %v904 = vmul.f32 %v902, %v902
    %v905 = vsel %vm30, %v903, 0.0
    %906 = vadd.xlane.f32.xlu0 %v905
    %v907 = vpop.xlane.xlu0 %906
    %v908 = vsel %vm30, %v904, 0.0
    %909 = vadd.xlane.f32.xlu0 %v908
    %v910 = vpop.xlane.xlu0 %909
    %v911 = vmul.f32 %v907, %v771
    %v912 = vmul.f32 %v910, %v771
    %v913 = vadd.f32 %v911, 1e-05
    %v914 = vadd.f32 %v912, 1e-05
    %v915 = vrsqrt.pop %v913
    %v916 = vmul.f32 %v915, %v913
    %v917 = vmul.f32 %v916, %v915
    %v918 = vmul.f32 0.5, %v917
    %v919 = vsub.f32 1.5, %v918
    %v920 = vmul.f32 %v915, %v919
    %vm921 = vweird.f32 %v913
    %vm922 = vweird.f32 %v915
    %vm923 = vmor %vm921, %vm922
    %v924 = vsel %vm923, %v915, %v920
    %v925 = vrsqrt.pop %v914
    %v926 = vmul.f32 %v925, %v914
    %v927 = vmul.f32 %v926, %v925
    %v928 = vmul.f32 0.5, %v927
    %v929 = vsub.f32 1.5, %v928
    %v930 = vmul.f32 %v925, %v929
    %vm931 = vweird.f32 %v914
    %vm932 = vweird.f32 %v925
    %vm933 = vmor %vm931, %vm932
    %v934 = vsel %vm933, %v925, %v930
    %v935 = vmul.f32 %v901, %v924
    %v936 = vmul.f32 %v902, %v934
    %v937 = vperm.slane %v23, 0
    %v938 = vmul.f32 %v935, %v937
    %v939 = vmul.f32 %v936, %v937
    %v940 = vperm.slane %v24, 0
    %v941 = vadd.f32 %v938, %v940
    %v942 = vadd.f32 %v939, %v940
    %943 = vst.msk [vmem:[#allocation2] sm:$0xff] %vm30, %v941
    %944 = vst.msk [vmem:[#allocation2 + $0x8] sm:$0xff] %vm30, %v942
    // Predicated region
    $region14: #{encoder_block.1} parent=1 // pred_check
      _
    $region15: #{encoder_block.1} parent=1 // pred_check_branch
      %946 = sbr.rel (0) target = $region17
    $region16: #{encoder_block.1} parent=1 // pred_region
      %948 = vsyncadd [#allocation3], 0
      %s949 = sshll.u32 [#allocation2], 4
      %s950 = int_to_ptr.vmem [resolvable:$true] %s949
      %s951 = sshll.u32 %s3, 4
      %s952 = int_to_ptr.hbm [resolvable:$true] %s951
      %957 = dma.vmem_to_hbm [thread:$0]  %s950, 256, %s952, [#allocation3], 128, 128, 8
    $region17: #{encoder_block.1} parent=1 // pred_fallthru
      _
    // Predicated region
    $region18: #{encoder_block.1} parent=1 // pred_check
      _
    $region19: #{encoder_block.1} parent=1 // pred_check_branch
      %959 = sbr.rel (0) target = $region21
    $region20: #{encoder_block.1} parent=1 // pred_region
      %961 = dma.done [#allocation3], 256
    $region21: #{encoder_block.1} parent=1 // pred_fallthru
      _
    %962 = vsyncpa [#allocation3], 1

</llo_original>
